<compile_context>
chip_gen: v7x
topology: tpu7x:2x2x1
jax: 0.10.0
libtpu: 0.0.40
codegen_flags: <defaults>
</compile_context>

<pallas_src>
import functools

import jax
import jax.numpy as jnp
from jax.experimental import pallas as pl
from jax.experimental.pallas import tpu as pltpu

LANE = 128
SUBLANE = 8


def _round_up(x, m):
    return (x + m - 1) // m * m


def _make_mlp_kernel(c_dim):
    """Build the kernel for a (static, small) channel count c_dim."""

    def kernel(w1_ref, b1_ref, w2_ref, b2_ref, x_ref, o_ref):
        # x_ref / o_ref: (C, TR, 128) VMEM tiles -> dense (TR, 128) slabs.
        # w*_ref: (C, C) f32 in SMEM, b*_ref: (C,) f32 in SMEM.
        xc = [x_ref[c] for c in range(c_dim)]  # C x (TR, 128), lane/sublane dense

        # Hoist SMEM scalar reads of weights/biases once per tile.
        w1 = [[w1_ref[o, c] for c in range(c_dim)] for o in range(c_dim)]
        w2 = [[w2_ref[o, c] for c in range(c_dim)] for o in range(c_dim)]
        b1 = [b1_ref[o] for o in range(c_dim)]
        b2 = [b2_ref[o] for o in range(c_dim)]

        # Layer 1: h_o = tanh(b1[o] + sum_c w1[o,c] * x_c)   (VPU FMAs + EUP tanh)
        h = []
        for o in range(c_dim):
            acc = xc[0] * w1[o][0]
            for c in range(1, c_dim):
                acc = acc + xc[c] * w1[o][c]
            h.append(jnp.tanh(acc + b1[o]))

        # Layer 2: y_o = b2[o] + sum_c w2[o,c] * h_c; dense (TR,128) stores.
        for o in range(c_dim):
            acc = h[0] * w2[o][0]
            for c in range(1, c_dim):
                acc = acc + h[c] * w2[o][c]
            o_ref[o] = (acc + b2[o]).astype(o_ref.dtype)

    return kernel


@functools.partial(jax.jit, static_argnames=("tile_r",))
def mlp_pallas(x_ncdhw, w1, b1, w2, b2, *, tile_r=None):
    """x_ncdhw: (N, C, D, H, W) f32.  w*: (C, C) squeezed 1x1x1 conv weights, b*: (C,)."""
    N, C, D, H, W = x_ncdhw.shape
    S = D * H * W
    S128 = _round_up(S, LANE)

    x3 = x_ncdhw.reshape(N, C, S)  # contiguous: metadata-only
    if S128 != S:
        # Only the <128-lane residual is padded (required for the (R,128) view);
        # there is no full-tensor pad tied to the tile size.
        x3 = jnp.pad(x3, ((0, 0), (0, 0), (0, S128 - S)))
    R = S128 // LANE
    x4 = x3.reshape(N, C, R, LANE)  # metadata-only

    # ---- tile-size selection (v7x-aware VMEM budget) ------------------------
    if tile_r is None:
        # Resident VMEM = 2 double-buffers x (in + out) x C x tile_r x 128 x 4B.
        # Keep it <= ~16-32 MiB so it fits v7x (64 MiB physical) comfortably;
        # C=4 -> tile_r = 2048 -> ~4 MiB per input block, ~16 MiB resident.
        budget = 32 * 1024 * 1024
        tile_r = budget // (2 * 2 * 4 * C * LANE)
        tile_r = max(SUBLANE, min(2048, tile_r // SUBLANE * SUBLANE))
    # Keep >= 2 programs on a parallel axis for the 2 TensorCores on v7x.
    if N == 1 and R > 2 * SUBLANE:
        tile_r = min(tile_r, _round_up(pl.cdiv(R, 2), SUBLANE))
    if tile_r >= R:
        tile_r = R  # block == full array extent on that dim: always legal
    else:
        tile_r = max(SUBLANE, tile_r // SUBLANE * SUBLANE)  # (8,128) tiling rule

    num_r = pl.cdiv(R, tile_r)  # ragged last block OK: elementwise along S
    grid = (N, num_r)

    resident_bytes = 2 * 2 * C * tile_r * LANE * 4
    vmem_limit = int(min(64 * 1024 * 1024,
                         max(resident_bytes + 8 * 1024 * 1024, 32 * 1024 * 1024)))

    blk = pl.BlockSpec(
        (None, C, tile_r, LANE),
        lambda n, r, w1_s, b1_s, w2_s, b2_s: (n, 0, r, 0),
    )

    cost = pl.CostEstimate(
        flops=4 * C * C * N * S,           # 2 layers x (C mul + C add) per elem
        transcendentals=C * N * S,         # one tanh per hidden element
        bytes_accessed=2 * N * C * S * 4 + 2 * (C * C + C) * 4,
    )

    out4 = pl.pallas_call(
        _make_mlp_kernel(C),
        out_shape=jax.ShapeDtypeStruct((N, C, R, LANE), x_ncdhw.dtype),
        grid_spec=pltpu.PrefetchScalarGridSpec(
            num_scalar_prefetch=4,  # w1, b1, w2, b2 land in SMEM
            grid=grid,
            in_specs=[blk],
            out_specs=blk,
        ),
        compiler_params=pltpu.CompilerParams(
            dimension_semantics=("parallel", "parallel"),
            vmem_limit_bytes=vmem_limit,
        ),
        cost_estimate=cost,
    )(w1, b1, w2, b2, x4)

    out3 = out4.reshape(N, C, S128)
    if S128 != S:
        out3 = out3[:, :, :S]
    return out3.reshape(N, C, D, H, W)


def reference_mlp(x_ncdhw, w1, b1, w2, b2):
    """Pure-JAX reference matching the PyTorch module exactly."""
    h = jnp.einsum("ncdhw,oc->nodhw", x_ncdhw, w1) + b1[None, :, None, None, None]
    h = jnp.tanh(h)
    return jnp.einsum("ncdhw,oc->nodhw", h, w2) + b2[None, :, None, None, None]


if __name__ == "__main__":
    key = jax.random.PRNGKey(0)
    N, C, D, H, W = 2, 4, 4, 8, 8  # S = 256 spatial voxels per (n, c)

    k_x, k_w1, k_b1, k_w2, k_b2 = jax.random.split(key, 5)
    x = jax.random.normal(k_x, (N, C, D, H, W), dtype=jnp.float32)

    # Conv3d(kernel_size=1) weight (C, C, 1, 1, 1) squeezed to (C, C).
    bound = 1.0 / (C ** 0.5)
    w1 = jax.random.uniform(k_w1, (C, C), minval=-bound, maxval=bound, dtype=jnp.float32)
    b1 = jax.random.uniform(k_b1, (C,), minval=-bound, maxval=bound, dtype=jnp.float32)
    w2 = jax.random.uniform(k_w2, (C, C), minval=-bound, maxval=bound, dtype=jnp.float32)
    b2 = jax.random.uniform(k_b2, (C,), minval=-bound, maxval=bound, dtype=jnp.float32)

    out = jax.block_until_ready(mlp_pallas(x, w1, b1, w2, b2))
    ref = reference_mlp(x, w1, b1, w2, b2)

    assert out.shape == (N, C, D, H, W)
    assert jnp.allclose(out, ref, atol=1e-5, rtol=1e-5), "mismatch vs reference"

    print("KERNEL_OK")
</pallas_src>

<mosaic_0001>
module attributes {stable_mosaic.version = 11 : i64} {
  func.func @kernel(%arg0: i32, %arg1: i32, %arg2: memref<4x4xf32, #tpu.memory_space<smem>>, %arg3: memref<4xf32, #tpu.memory_space<smem>>, %arg4: memref<4x4xf32, #tpu.memory_space<smem>>, %arg5: memref<4xf32, #tpu.memory_space<smem>>, %arg6: memref<1x4x2x128xf32, #tpu.memory_space<vmem>>, %arg7: memref<1x4x2x128xf32, #tpu.memory_space<vmem>>) attributes {dimension_semantics = [#tpu.dimension_semantics<parallel>, #tpu.dimension_semantics<parallel>], iteration_bounds = array<i64: 2, 1>, scalar_prefetch = 4 : i64, scratch_operands = 0 : i64, tpu.core_type = #tpu.core_type<tc>, window_params = [{transform_indices = @transform_0, window_bounds = array<i64: 1, 4, 2, 128>}, {transform_indices = @transform_1, window_bounds = array<i64: 1, 4, 2, 128>}]} {
    %c0 = arith.constant 0 : index
    %c0_0 = arith.constant 0 : index
    %c0_1 = arith.constant 0 : index
    %c0_2 = arith.constant 0 : index
    %0 = vector.load %arg6[%c0, %c0_0, %c0_1, %c0_2] : memref<1x4x2x128xf32, #tpu.memory_space<vmem>>, vector<1x1x2x128xf32>
    %1 = vector.shape_cast %0 : vector<1x1x2x128xf32> to vector<2x128xf32>
    %c0_3 = arith.constant 0 : index
    %c1 = arith.constant 1 : index
    %c0_4 = arith.constant 0 : index
    %c0_5 = arith.constant 0 : index
    %2 = vector.load %arg6[%c0_3, %c1, %c0_4, %c0_5] : memref<1x4x2x128xf32, #tpu.memory_space<vmem>>, vector<1x1x2x128xf32>
    %3 = vector.shape_cast %2 : vector<1x1x2x128xf32> to vector<2x128xf32>
    %c0_6 = arith.constant 0 : index
    %c2 = arith.constant 2 : index
    %c0_7 = arith.constant 0 : index
    %c0_8 = arith.constant 0 : index
    %4 = vector.load %arg6[%c0_6, %c2, %c0_7, %c0_8] : memref<1x4x2x128xf32, #tpu.memory_space<vmem>>, vector<1x1x2x128xf32>
    %5 = vector.shape_cast %4 : vector<1x1x2x128xf32> to vector<2x128xf32>
    %c0_9 = arith.constant 0 : index
    %c3 = arith.constant 3 : index
    %c0_10 = arith.constant 0 : index
    %c0_11 = arith.constant 0 : index
    %6 = vector.load %arg6[%c0_9, %c3, %c0_10, %c0_11] : memref<1x4x2x128xf32, #tpu.memory_space<vmem>>, vector<1x1x2x128xf32>
    %7 = vector.shape_cast %6 : vector<1x1x2x128xf32> to vector<2x128xf32>
    %c0_12 = arith.constant 0 : index
    %c0_13 = arith.constant 0 : index
    %8 = memref.load %arg2[%c0_12, %c0_13] : memref<4x4xf32, #tpu.memory_space<smem>>
    %c0_14 = arith.constant 0 : index
    %c1_15 = arith.constant 1 : index
    %9 = memref.load %arg2[%c0_14, %c1_15] : memref<4x4xf32, #tpu.memory_space<smem>>
    %c0_16 = arith.constant 0 : index
    %c2_17 = arith.constant 2 : index
    %10 = memref.load %arg2[%c0_16, %c2_17] : memref<4x4xf32, #tpu.memory_space<smem>>
    %c0_18 = arith.constant 0 : index
    %c3_19 = arith.constant 3 : index
    %11 = memref.load %arg2[%c0_18, %c3_19] : memref<4x4xf32, #tpu.memory_space<smem>>
    %c1_20 = arith.constant 1 : index
    %c0_21 = arith.constant 0 : index
    %12 = memref.load %arg2[%c1_20, %c0_21] : memref<4x4xf32, #tpu.memory_space<smem>>
    %c1_22 = arith.constant 1 : index
    %c1_23 = arith.constant 1 : index
    %13 = memref.load %arg2[%c1_22, %c1_23] : memref<4x4xf32, #tpu.memory_space<smem>>
    %c1_24 = arith.constant 1 : index
    %c2_25 = arith.constant 2 : index
    %14 = memref.load %arg2[%c1_24, %c2_25] : memref<4x4xf32, #tpu.memory_space<smem>>
    %c1_26 = arith.constant 1 : index
    %c3_27 = arith.constant 3 : index
    %15 = memref.load %arg2[%c1_26, %c3_27] : memref<4x4xf32, #tpu.memory_space<smem>>
    %c2_28 = arith.constant 2 : index
    %c0_29 = arith.constant 0 : index
    %16 = memref.load %arg2[%c2_28, %c0_29] : memref<4x4xf32, #tpu.memory_space<smem>>
    %c2_30 = arith.constant 2 : index
    %c1_31 = arith.constant 1 : index
    %17 = memref.load %arg2[%c2_30, %c1_31] : memref<4x4xf32, #tpu.memory_space<smem>>
    %c2_32 = arith.constant 2 : index
    %c2_33 = arith.constant 2 : index
    %18 = memref.load %arg2[%c2_32, %c2_33] : memref<4x4xf32, #tpu.memory_space<smem>>
    %c2_34 = arith.constant 2 : index
    %c3_35 = arith.constant 3 : index
    %19 = memref.load %arg2[%c2_34, %c3_35] : memref<4x4xf32, #tpu.memory_space<smem>>
    %c3_36 = arith.constant 3 : index
    %c0_37 = arith.constant 0 : index
    %20 = memref.load %arg2[%c3_36, %c0_37] : memref<4x4xf32, #tpu.memory_space<smem>>
    %c3_38 = arith.constant 3 : index
    %c1_39 = arith.constant 1 : index
    %21 = memref.load %arg2[%c3_38, %c1_39] : memref<4x4xf32, #tpu.memory_space<smem>>
    %c3_40 = arith.constant 3 : index
    %c2_41 = arith.constant 2 : index
    %22 = memref.load %arg2[%c3_40, %c2_41] : memref<4x4xf32, #tpu.memory_space<smem>>
    %c3_42 = arith.constant 3 : index
    %c3_43 = arith.constant 3 : index
    %23 = memref.load %arg2[%c3_42, %c3_43] : memref<4x4xf32, #tpu.memory_space<smem>>
    %c0_44 = arith.constant 0 : index
    %c0_45 = arith.constant 0 : index
    %24 = memref.load %arg4[%c0_44, %c0_45] : memref<4x4xf32, #tpu.memory_space<smem>>
    %c0_46 = arith.constant 0 : index
    %c1_47 = arith.constant 1 : index
    %25 = memref.load %arg4[%c0_46, %c1_47] : memref<4x4xf32, #tpu.memory_space<smem>>
    %c0_48 = arith.constant 0 : index
    %c2_49 = arith.constant 2 : index
    %26 = memref.load %arg4[%c0_48, %c2_49] : memref<4x4xf32, #tpu.memory_space<smem>>
    %c0_50 = arith.constant 0 : index
    %c3_51 = arith.constant 3 : index
    %27 = memref.load %arg4[%c0_50, %c3_51] : memref<4x4xf32, #tpu.memory_space<smem>>
    %c1_52 = arith.constant 1 : index
    %c0_53 = arith.constant 0 : index
    %28 = memref.load %arg4[%c1_52, %c0_53] : memref<4x4xf32, #tpu.memory_space<smem>>
    %c1_54 = arith.constant 1 : index
    %c1_55 = arith.constant 1 : index
    %29 = memref.load %arg4[%c1_54, %c1_55] : memref<4x4xf32, #tpu.memory_space<smem>>
    %c1_56 = arith.constant 1 : index
    %c2_57 = arith.constant 2 : index
    %30 = memref.load %arg4[%c1_56, %c2_57] : memref<4x4xf32, #tpu.memory_space<smem>>
    %c1_58 = arith.constant 1 : index
    %c3_59 = arith.constant 3 : index
    %31 = memref.load %arg4[%c1_58, %c3_59] : memref<4x4xf32, #tpu.memory_space<smem>>
    %c2_60 = arith.constant 2 : index
    %c0_61 = arith.constant 0 : index
    %32 = memref.load %arg4[%c2_60, %c0_61] : memref<4x4xf32, #tpu.memory_space<smem>>
    %c2_62 = arith.constant 2 : index
    %c1_63 = arith.constant 1 : index
    %33 = memref.load %arg4[%c2_62, %c1_63] : memref<4x4xf32, #tpu.memory_space<smem>>
    %c2_64 = arith.constant 2 : index
    %c2_65 = arith.constant 2 : index
    %34 = memref.load %arg4[%c2_64, %c2_65] : memref<4x4xf32, #tpu.memory_space<smem>>
    %c2_66 = arith.constant 2 : index
    %c3_67 = arith.constant 3 : index
    %35 = memref.load %arg4[%c2_66, %c3_67] : memref<4x4xf32, #tpu.memory_space<smem>>
    %c3_68 = arith.constant 3 : index
    %c0_69 = arith.constant 0 : index
    %36 = memref.load %arg4[%c3_68, %c0_69] : memref<4x4xf32, #tpu.memory_space<smem>>
    %c3_70 = arith.constant 3 : index
    %c1_71 = arith.constant 1 : index
    %37 = memref.load %arg4[%c3_70, %c1_71] : memref<4x4xf32, #tpu.memory_space<smem>>
    %c3_72 = arith.constant 3 : index
    %c2_73 = arith.constant 2 : index
    %38 = memref.load %arg4[%c3_72, %c2_73] : memref<4x4xf32, #tpu.memory_space<smem>>
    %c3_74 = arith.constant 3 : index
    %c3_75 = arith.constant 3 : index
    %39 = memref.load %arg4[%c3_74, %c3_75] : memref<4x4xf32, #tpu.memory_space<smem>>
    %c0_76 = arith.constant 0 : index
    %40 = memref.load %arg3[%c0_76] : memref<4xf32, #tpu.memory_space<smem>>
    %c1_77 = arith.constant 1 : index
    %41 = memref.load %arg3[%c1_77] : memref<4xf32, #tpu.memory_space<smem>>
    %c2_78 = arith.constant 2 : index
    %42 = memref.load %arg3[%c2_78] : memref<4xf32, #tpu.memory_space<smem>>
    %c3_79 = arith.constant 3 : index
    %43 = memref.load %arg3[%c3_79] : memref<4xf32, #tpu.memory_space<smem>>
    %c0_80 = arith.constant 0 : index
    %44 = memref.load %arg5[%c0_80] : memref<4xf32, #tpu.memory_space<smem>>
    %c1_81 = arith.constant 1 : index
    %45 = memref.load %arg5[%c1_81] : memref<4xf32, #tpu.memory_space<smem>>
    %c2_82 = arith.constant 2 : index
    %46 = memref.load %arg5[%c2_82] : memref<4xf32, #tpu.memory_space<smem>>
    %c3_83 = arith.constant 3 : index
    %47 = memref.load %arg5[%c3_83] : memref<4xf32, #tpu.memory_space<smem>>
    %48 = vector.broadcast %8 : f32 to vector<2x128xf32>
    %49 = arith.mulf %1, %48 : vector<2x128xf32>
    %50 = vector.broadcast %9 : f32 to vector<2x128xf32>
    %51 = arith.mulf %3, %50 : vector<2x128xf32>
    %52 = arith.addf %49, %51 : vector<2x128xf32>
    %53 = vector.broadcast %10 : f32 to vector<2x128xf32>
    %54 = arith.mulf %5, %53 : vector<2x128xf32>
    %55 = arith.addf %52, %54 : vector<2x128xf32>
    %56 = vector.broadcast %11 : f32 to vector<2x128xf32>
    %57 = arith.mulf %7, %56 : vector<2x128xf32>
    %58 = arith.addf %55, %57 : vector<2x128xf32>
    %59 = vector.broadcast %40 : f32 to vector<2x128xf32>
    %60 = arith.addf %58, %59 : vector<2x128xf32>
    %61 = math.tanh %60 : vector<2x128xf32>
    %62 = vector.broadcast %12 : f32 to vector<2x128xf32>
    %63 = arith.mulf %1, %62 : vector<2x128xf32>
    %64 = vector.broadcast %13 : f32 to vector<2x128xf32>
    %65 = arith.mulf %3, %64 : vector<2x128xf32>
    %66 = arith.addf %63, %65 : vector<2x128xf32>
    %67 = vector.broadcast %14 : f32 to vector<2x128xf32>
    %68 = arith.mulf %5, %67 : vector<2x128xf32>
    %69 = arith.addf %66, %68 : vector<2x128xf32>
    %70 = vector.broadcast %15 : f32 to vector<2x128xf32>
    %71 = arith.mulf %7, %70 : vector<2x128xf32>
    %72 = arith.addf %69, %71 : vector<2x128xf32>
    %73 = vector.broadcast %41 : f32 to vector<2x128xf32>
    %74 = arith.addf %72, %73 : vector<2x128xf32>
    %75 = math.tanh %74 : vector<2x128xf32>
    %76 = vector.broadcast %16 : f32 to vector<2x128xf32>
    %77 = arith.mulf %1, %76 : vector<2x128xf32>
    %78 = vector.broadcast %17 : f32 to vector<2x128xf32>
    %79 = arith.mulf %3, %78 : vector<2x128xf32>
    %80 = arith.addf %77, %79 : vector<2x128xf32>
    %81 = vector.broadcast %18 : f32 to vector<2x128xf32>
    %82 = arith.mulf %5, %81 : vector<2x128xf32>
    %83 = arith.addf %80, %82 : vector<2x128xf32>
    %84 = vector.broadcast %19 : f32 to vector<2x128xf32>
    %85 = arith.mulf %7, %84 : vector<2x128xf32>
    %86 = arith.addf %83, %85 : vector<2x128xf32>
    %87 = vector.broadcast %42 : f32 to vector<2x128xf32>
    %88 = arith.addf %86, %87 : vector<2x128xf32>
    %89 = math.tanh %88 : vector<2x128xf32>
    %90 = vector.broadcast %20 : f32 to vector<2x128xf32>
    %91 = arith.mulf %1, %90 : vector<2x128xf32>
    %92 = vector.broadcast %21 : f32 to vector<2x128xf32>
    %93 = arith.mulf %3, %92 : vector<2x128xf32>
    %94 = arith.addf %91, %93 : vector<2x128xf32>
    %95 = vector.broadcast %22 : f32 to vector<2x128xf32>
    %96 = arith.mulf %5, %95 : vector<2x128xf32>
    %97 = arith.addf %94, %96 : vector<2x128xf32>
    %98 = vector.broadcast %23 : f32 to vector<2x128xf32>
    %99 = arith.mulf %7, %98 : vector<2x128xf32>
    %100 = arith.addf %97, %99 : vector<2x128xf32>
    %101 = vector.broadcast %43 : f32 to vector<2x128xf32>
    %102 = arith.addf %100, %101 : vector<2x128xf32>
    %103 = math.tanh %102 : vector<2x128xf32>
    %104 = vector.broadcast %24 : f32 to vector<2x128xf32>
    %105 = arith.mulf %61, %104 : vector<2x128xf32>
    %106 = vector.broadcast %25 : f32 to vector<2x128xf32>
    %107 = arith.mulf %75, %106 : vector<2x128xf32>
    %108 = arith.addf %105, %107 : vector<2x128xf32>
    %109 = vector.broadcast %26 : f32 to vector<2x128xf32>
    %110 = arith.mulf %89, %109 : vector<2x128xf32>
    %111 = arith.addf %108, %110 : vector<2x128xf32>
    %112 = vector.broadcast %27 : f32 to vector<2x128xf32>
    %113 = arith.mulf %103, %112 : vector<2x128xf32>
    %114 = arith.addf %111, %113 : vector<2x128xf32>
    %115 = vector.broadcast %44 : f32 to vector<2x128xf32>
    %116 = arith.addf %114, %115 : vector<2x128xf32>
    %c0_84 = arith.constant 0 : index
    %c0_85 = arith.constant 0 : index
    %c0_86 = arith.constant 0 : index
    %c0_87 = arith.constant 0 : index
    %117 = vector.load %arg7[%c0_84, %c0_85, %c0_86, %c0_87] : memref<1x4x2x128xf32, #tpu.memory_space<vmem>>, vector<1x1x2x128xf32>
    %118 = vector.shape_cast %117 : vector<1x1x2x128xf32> to vector<2x128xf32>
    %119 = vector.shape_cast %116 : vector<2x128xf32> to vector<1x1x2x128xf32>
    tpu.vector_store %arg7[%c0_84, %c0_85, %c0_86, %c0_87], %119 {strides = array<i32>} : memref<1x4x2x128xf32, #tpu.memory_space<vmem>>, vector<1x1x2x128xf32>,
    %120 = vector.broadcast %28 : f32 to vector<2x128xf32>
    %121 = arith.mulf %61, %120 : vector<2x128xf32>
    %122 = vector.broadcast %29 : f32 to vector<2x128xf32>
    %123 = arith.mulf %75, %122 : vector<2x128xf32>
    %124 = arith.addf %121, %123 : vector<2x128xf32>
    %125 = vector.broadcast %30 : f32 to vector<2x128xf32>
    %126 = arith.mulf %89, %125 : vector<2x128xf32>
    %127 = arith.addf %124, %126 : vector<2x128xf32>
    %128 = vector.broadcast %31 : f32 to vector<2x128xf32>
    %129 = arith.mulf %103, %128 : vector<2x128xf32>
    %130 = arith.addf %127, %129 : vector<2x128xf32>
    %131 = vector.broadcast %45 : f32 to vector<2x128xf32>
    %132 = arith.addf %130, %131 : vector<2x128xf32>
    %c0_88 = arith.constant 0 : index
    %c1_89 = arith.constant 1 : index
    %c0_90 = arith.constant 0 : index
    %c0_91 = arith.constant 0 : index
    %133 = vector.load %arg7[%c0_88, %c1_89, %c0_90, %c0_91] : memref<1x4x2x128xf32, #tpu.memory_space<vmem>>, vector<1x1x2x128xf32>
    %134 = vector.shape_cast %133 : vector<1x1x2x128xf32> to vector<2x128xf32>
    %135 = vector.shape_cast %132 : vector<2x128xf32> to vector<1x1x2x128xf32>
    tpu.vector_store %arg7[%c0_88, %c1_89, %c0_90, %c0_91], %135 {strides = array<i32>} : memref<1x4x2x128xf32, #tpu.memory_space<vmem>>, vector<1x1x2x128xf32>,
    %136 = vector.broadcast %32 : f32 to vector<2x128xf32>
    %137 = arith.mulf %61, %136 : vector<2x128xf32>
    %138 = vector.broadcast %33 : f32 to vector<2x128xf32>
    %139 = arith.mulf %75, %138 : vector<2x128xf32>
    %140 = arith.addf %137, %139 : vector<2x128xf32>
    %141 = vector.broadcast %34 : f32 to vector<2x128xf32>
    %142 = arith.mulf %89, %141 : vector<2x128xf32>
    %143 = arith.addf %140, %142 : vector<2x128xf32>
    %144 = vector.broadcast %35 : f32 to vector<2x128xf32>
    %145 = arith.mulf %103, %144 : vector<2x128xf32>
    %146 = arith.addf %143, %145 : vector<2x128xf32>
    %147 = vector.broadcast %46 : f32 to vector<2x128xf32>
    %148 = arith.addf %146, %147 : vector<2x128xf32>
    %c0_92 = arith.constant 0 : index
    %c2_93 = arith.constant 2 : index
    %c0_94 = arith.constant 0 : index
    %c0_95 = arith.constant 0 : index
    %149 = vector.load %arg7[%c0_92, %c2_93, %c0_94, %c0_95] : memref<1x4x2x128xf32, #tpu.memory_space<vmem>>, vector<1x1x2x128xf32>
    %150 = vector.shape_cast %149 : vector<1x1x2x128xf32> to vector<2x128xf32>
    %151 = vector.shape_cast %148 : vector<2x128xf32> to vector<1x1x2x128xf32>
    tpu.vector_store %arg7[%c0_92, %c2_93, %c0_94, %c0_95], %151 {strides = array<i32>} : memref<1x4x2x128xf32, #tpu.memory_space<vmem>>, vector<1x1x2x128xf32>,
    %152 = vector.broadcast %36 : f32 to vector<2x128xf32>
    %153 = arith.mulf %61, %152 : vector<2x128xf32>
    %154 = vector.broadcast %37 : f32 to vector<2x128xf32>
    %155 = arith.mulf %75, %154 : vector<2x128xf32>
    %156 = arith.addf %153, %155 : vector<2x128xf32>
    %157 = vector.broadcast %38 : f32 to vector<2x128xf32>
    %158 = arith.mulf %89, %157 : vector<2x128xf32>
    %159 = arith.addf %156, %158 : vector<2x128xf32>
    %160 = vector.broadcast %39 : f32 to vector<2x128xf32>
    %161 = arith.mulf %103, %160 : vector<2x128xf32>
    %162 = arith.addf %159, %161 : vector<2x128xf32>
    %163 = vector.broadcast %47 : f32 to vector<2x128xf32>
    %164 = arith.addf %162, %163 : vector<2x128xf32>
    %c0_96 = arith.constant 0 : index
    %c3_97 = arith.constant 3 : index
    %c0_98 = arith.constant 0 : index
    %c0_99 = arith.constant 0 : index
    %165 = vector.load %arg7[%c0_96, %c3_97, %c0_98, %c0_99] : memref<1x4x2x128xf32, #tpu.memory_space<vmem>>, vector<1x1x2x128xf32>
    %166 = vector.shape_cast %165 : vector<1x1x2x128xf32> to vector<2x128xf32>
    %167 = vector.shape_cast %164 : vector<2x128xf32> to vector<1x1x2x128xf32>
    tpu.vector_store %arg7[%c0_96, %c3_97, %c0_98, %c0_99], %167 {strides = array<i32>} : memref<1x4x2x128xf32, #tpu.memory_space<vmem>>, vector<1x1x2x128xf32>,
    return
  }
  func.func @transform_0(%arg0: i32, %arg1: i32, %arg2: memref<4x4xf32, #tpu.memory_space<smem>>, %arg3: memref<4xf32, #tpu.memory_space<smem>>, %arg4: memref<4x4xf32, #tpu.memory_space<smem>>, %arg5: memref<4xf32, #tpu.memory_space<smem>>) -> (i32, i32, i32, i32) {
    %c0_i32 = arith.constant 0 : i32
    %c0_i32_0 = arith.constant 0 : i32
    %c0_i32_1 = arith.constant 0 : i32
    return %arg0, %c0_i32, %arg1, %c0_i32_0 : i32, i32, i32, i32
  }
  func.func @transform_1(%arg0: i32, %arg1: i32, %arg2: memref<4x4xf32, #tpu.memory_space<smem>>, %arg3: memref<4xf32, #tpu.memory_space<smem>>, %arg4: memref<4x4xf32, #tpu.memory_space<smem>>, %arg5: memref<4xf32, #tpu.memory_space<smem>>) -> (i32, i32, i32, i32) {
    %c0_i32 = arith.constant 0 : i32
    %c0_i32_0 = arith.constant 0 : i32
    %c0_i32_1 = arith.constant 0 : i32
    return %arg0, %c0_i32, %arg1, %c0_i32_0 : i32, i32, i32, i32
  }
}

</mosaic_0001>

<llo_original>
// kernel: mlp_pallas.1
$region0: #{mlp_pallas.1}
  #allocation0 [shape = 'u32[]', space=smem, size = 0x4, offset = 0x4, fixed_abs, tag = 'smem constant byte address 0x4 - core index']
  #allocation1 [shape = 'u32[144,128]{1,0:T(1,128)}', space=vmem, size = 0x12000, scoped, tag = 'internal scratch']
  #allocation2 [shape = 's32[1]{0}', space=sflag, size = 0x4, scoped, tag = 'scoped memory for mlp_pallas.1']
  #allocation3 [shape = 'u8[2048]{0}', space=smem, size = 0x800, scoped, tag = 'prefetched SMEM operand 0']
  #allocation4 [shape = 'u8[512]{0}', space=smem, size = 0x200, scoped, tag = 'prefetched SMEM operand 1']
  #allocation5 [shape = 'u8[2048]{0}', space=smem, size = 0x800, scoped, tag = 'prefetched SMEM operand 2']
  #allocation6 [shape = 'u8[512]{0}', space=smem, size = 0x200, scoped, tag = 'prefetched SMEM operand 3']
  %s0 = inlined_call_operand.vmem [shape: f32[4,4], index: 0, kind: input, shape index: {}]
  %s1 = inlined_call_operand.vmem [shape: f32[4], index: 1, kind: input, shape index: {}]
  %s2 = inlined_call_operand.vmem [shape: f32[4,4], index: 2, kind: input, shape index: {}]
  %s3 = inlined_call_operand.vmem [shape: f32[4], index: 3, kind: input, shape index: {}]
  %s4 = inlined_call_operand.vmem [shape: f32[2,4,2,128], index: 4, kind: input, shape index: {}]
  %s5 = inlined_call_operand.vmem [shape: f32[2,4,2,128], index: 5, kind: output, shape index: {}]
  %s6 = sld [smem:[#allocation0]]
  $region37: #{mlp_pallas.1} parent=0
    _
  %s8 = ssub.s32 1, %s6
  %s9 = scalar_select 0, %s8, %s6
  %s10 = sshll.u32 %s0, 4
  %s11 = int_to_ptr.vmem [resolvable:$true] %s10
  %13 = dma.vmem_to_smem %s11, 64, [#allocation3], [#allocation2]
  %s14 = sshll.u32 %s1, 4
  %s15 = int_to_ptr.vmem [resolvable:$true] %s14
  %17 = dma.vmem_to_smem %s15, 16, [#allocation4], [#allocation2]
  %s18 = sshll.u32 %s2, 4
  %s19 = int_to_ptr.vmem [resolvable:$true] %s18
  %21 = dma.vmem_to_smem %s19, 64, [#allocation5], [#allocation2]
  %s22 = sshll.u32 %s3, 4
  %s23 = int_to_ptr.vmem [resolvable:$true] %s22
  %25 = dma.vmem_to_smem %s23, 16, [#allocation6], [#allocation2]
  %26 = dma.done [#allocation2], 160
  %27 = sfence
  loop: start=0, step=1, limit=4
  $region2: #{mlp_pallas.1} parent=0 // loop_pre_header
    _
  $region3: #{mlp_pallas.1} parent=0 // loop_header
    %s29 = sphi 0, %s33
    %p30 = scmp.ge.s32.totalorder %s29, 4
    %s36 = sphi 0, %s48
    %s37 = sphi 0, %s44
    %s38 = sphi 0, %s36
    %s39 = sphi 0, %s37
    %s40 = sphi 0, %s38
    %s41 = sphi 0, %s39
    %s53 = sphi 0, %s55
    %s56 = sphi 0, %s53
    %s57 = sphi 0, %s56
    %s73 = sphi 0, %s57
    %s81 = sphi 0, %s83
    %s84 = sphi 0, %s81
    %s85 = sphi 0, %s84
    %s101 = sphi 0, %s85
  $region4: #{mlp_pallas.1} parent=0 // loop_header_branch
    %32 = sbr.rel (%p30) target = $region8
  $region5: #{mlp_pallas.1} parent=0 // loop_body
    %s34 = ssub.s32 %s29, 1
    %s35 = ssub.s32 %s29, 2
    %s42 = sadd.s32 1, %s37
    %p43 = scmp.ge.s32.totalorder %s42, 1
    %s44 = scalar_select %p43, 0, %s42
    %s45 = sadd.s32 1, %s36
    %s46 = scalar_select %p43, %s45, %s36
    %p47 = scmp.ge.s32.totalorder %s46, 2
    %s48 = scalar_select %p47, 0, %s46
    %s49 = ssub.s32 %s36, %s48
    %s50 = ssub.s32 %s37, %s44
    %s51 = sor.u32 %s49, %s50
    %p52 = scmp.eq.s32.totalorder %s51, 0
    %s54 = sadd.s32 %s53, 1
    %s55 = scalar_select %p52, %s53, %s54
    %p58 = pneg %p52
    %p59 = scmp.eq.s32.totalorder %s29, 1
    %p60 = por %p58, %p59
    %p61 = scmp.ne.s32.totalorder %s53, %s56
    %p62 = scmp.eq.s32.totalorder %s29, 0
    %p63 = por %p61, %p62
    %p64 = scmp.ne.s32.totalorder %s53, %s56
    %p65 = scmp.eq.s32.totalorder %s34, 1
    %p66 = por %p64, %p65
    %p67 = scmp.ne.s32.totalorder %s56, %s57
    %p68 = scmp.eq.s32.totalorder %s34, 0
    %p69 = por %p67, %p68
    %p70 = scmp.ne.s32.totalorder %s56, %s57
    %p71 = scmp.eq.s32.totalorder %s35, 1
    %p72 = por %p70, %p71
    %p74 = scmp.ne.s32.totalorder %s57, %s73
    %p75 = scmp.eq.s32.totalorder %s35, 0
    %p76 = por %p74, %p75
    %s77 = ssub.s32 %s36, %s48
    %s78 = ssub.s32 %s37, %s44
    %s79 = sor.u32 %s77, %s78
    %p80 = scmp.eq.s32.totalorder %s79, 0
    %s82 = sadd.s32 %s81, 1
    %s83 = scalar_select %p80, %s81, %s82
    %p86 = pneg %p80
    %p87 = scmp.eq.s32.totalorder %s29, 1
    %p88 = por %p86, %p87
    %p89 = scmp.ne.s32.totalorder %s81, %s84
    %p90 = scmp.eq.s32.totalorder %s29, 0
    %p91 = por %p89, %p90
    %p92 = scmp.ne.s32.totalorder %s81, %s84
    %p93 = scmp.eq.s32.totalorder %s34, 1
    %p94 = por %p92, %p93
    %p95 = scmp.ne.s32.totalorder %s84, %s85
    %p96 = scmp.eq.s32.totalorder %s34, 0
    %p97 = por %p95, %p96
    %p98 = scmp.ne.s32.totalorder %s84, %s85
    %p99 = scmp.eq.s32.totalorder %s35, 1
    %p100 = por %p98, %p99
    %p102 = scmp.ne.s32.totalorder %s85, %s101
    %p103 = scmp.eq.s32.totalorder %s35, 0
    %p104 = por %p102, %p103
    %p105 = scmp.le.s32.totalorder 1, %s29
    %p106 = scmp.lt.s32.totalorder %s29, 3
    %p107 = pnand %p105, %p106
    %p108 = pneg %p107
    // Predicated region
    $region9: #{mlp_pallas.1} parent=5 // pred_check
      _
    $region10: #{mlp_pallas.1} parent=5 // pred_check_branch
      %110 = sbr.rel (%p107) target = $region12
    $region11: #{mlp_pallas.1} parent=5 // pred_region
      %s111 = ssub.s32 %s29, 1
    $region12: #{mlp_pallas.1} parent=5 // pred_fallthru
      _
    %p112 = scmp.lt.s32.totalorder %s29, 2
    // Predicated region
    $region13: #{mlp_pallas.1} parent=5 // pred_check
      %p113 = pneg %p112
    $region14: #{mlp_pallas.1} parent=5 // pred_check_branch
      %115 = sbr.rel (%p113) target = $region16
    $region15: #{mlp_pallas.1} parent=5 // pred_region
      // Predicated region
      $region17: #{mlp_pallas.1} parent=15 // pred_check
        %p116 = pneg %p63
      $region18: #{mlp_pallas.1} parent=15 // pred_check_branch
        %118 = sbr.rel (%p116) target = $region20
      $region19: #{mlp_pallas.1} parent=15 // pred_region
        %p119 = scmp.lt.s32.totalorder %s36, 1
        %s120 = scalar_select %p119, %s36, 1
        %p121 = scmp.lt.s32.totalorder %s37, 0
        %s122 = scalar_select %p121, %s37, 0
        %s123 = smul.addr %s120, 4
        %s124 = sadd.s32 %s122, %s123
        %s125 = smul.addr %s124, 2
        %s126 = scalar_lea.vmem %s4, %s125
      $region20: #{mlp_pallas.1} parent=15 // pred_fallthru
        _
    $region16: #{mlp_pallas.1} parent=5 // pred_fallthru
      _
    %p127 = scmp.le.s32.totalorder 1, %s29
    %p128 = scmp.lt.s32.totalorder %s29, 3
    %p129 = pnand %p127, %p128
    %p130 = pneg %p129
    // Predicated region
    $region21: #{mlp_pallas.1} parent=5 // pred_check
      _
    $region22: #{mlp_pallas.1} parent=5 // pred_check_branch
      %132 = sbr.rel (%p129) target = $region24
    $region23: #{mlp_pallas.1} parent=5 // pred_region
      %s133 = ssub.s32 %s29, 1
      %p134 = scmp.lt.s32.totalorder %s38, 1
      %s135 = scalar_select %p134, %s38, 1
      %p136 = scmp.lt.s32.totalorder %s39, 0
      %s137 = scalar_select %p136, %s39, 0
      %s138 = smul.addr %s135, 4
      %s139 = sadd.s32 %s137, %s138
      %s140 = smul.addr %s139, 2
      %s141 = scalar_lea.vmem %s4, %s140
      %p142 = pneg %p69
      %p143 = pneg %p66
      %p144 = pneg %p97
      %p145 = pneg %p94
      %p146 = scmp.lt.s32.totalorder %s38, 1
      %s147 = scalar_select %p146, %s38, 1
      %p148 = scmp.lt.s32.totalorder %s39, 0
      %s149 = scalar_select %p148, %s39, 0
      %s150 = smul.addr %s147, 4
      %s151 = sadd.s32 %s149, %s150
      %s152 = smul.addr %s151, 2
      %s153 = scalar_lea.vmem %s5, %s152
      %p154 = scmp.lt.s32.totalorder %s38, 1
      %s155 = scalar_select %p154, %s38, 1
      %p156 = scmp.lt.s32.totalorder %s39, 0
      %s157 = scalar_select %p156, %s39, 0
      %s158 = smul.addr %s155, 4
      %s159 = sadd.s32 %s157, %s158
      %s160 = smul.addr %s159, 2
      %s161 = scalar_lea.vmem %s4, %s160
      %p162 = scmp.lt.s32.totalorder %s38, 1
      %s163 = scalar_select %p162, %s38, 1
      %p164 = scmp.lt.s32.totalorder %s39, 0
      %s165 = scalar_select %p164, %s39, 0
      %s166 = smul.addr %s163, 4
      %s167 = sadd.s32 %s165, %s166
      %s168 = smul.addr %s167, 2
      %s169 = scalar_lea.vmem %s5, %s168
      %v170 = vld [vmem:[%s161] sm:$0x3]
      %s171 = scalar_lea.vmem %s161, 2
      %v172 = vld [vmem:[%s171] sm:$0x3]
      %s173 = scalar_lea.vmem %s161, 4
      %v174 = vld [vmem:[%s173] sm:$0x3]
      %s175 = scalar_lea.vmem %s161, 6
      %v176 = vld [vmem:[%s175] sm:$0x3]
      %s177 = sld [smem:[#allocation3]]
      %s178 = sld [smem:[#allocation3 + $0x1]]
      %s179 = sld [smem:[#allocation3 + $0x2]]
      %s180 = sld [smem:[#allocation3 + $0x3]]
      %s181 = sld [smem:[#allocation3 + $0x80]]
      %s182 = sld [smem:[#allocation3 + $0x81]]
      %s183 = sld [smem:[#allocation3 + $0x82]]
      %s184 = sld [smem:[#allocation3 + $0x83]]
      %s185 = sld [smem:[#allocation3 + $0x100]]
      %s186 = sld [smem:[#allocation3 + $0x101]]
      %s187 = sld [smem:[#allocation3 + $0x102]]
      %s188 = sld [smem:[#allocation3 + $0x103]]
      %s189 = sld [smem:[#allocation3 + $0x180]]
      %s190 = sld [smem:[#allocation3 + $0x181]]
      %s191 = sld [smem:[#allocation3 + $0x182]]
      %s192 = sld [smem:[#allocation3 + $0x183]]
      %s193 = sld [smem:[#allocation5]]
      %s194 = sld [smem:[#allocation5 + $0x1]]
      %s195 = sld [smem:[#allocation5 + $0x2]]
      %s196 = sld [smem:[#allocation5 + $0x3]]
      %s197 = sld [smem:[#allocation5 + $0x80]]
      %s198 = sld [smem:[#allocation5 + $0x81]]
      %s199 = sld [smem:[#allocation5 + $0x82]]
      %s200 = sld [smem:[#allocation5 + $0x83]]
      %s201 = sld [smem:[#allocation5 + $0x100]]
      %s202 = sld [smem:[#allocation5 + $0x101]]
      %s203 = sld [smem:[#allocation5 + $0x102]]
      %s204 = sld [smem:[#allocation5 + $0x103]]
      %s205 = sld [smem:[#allocation5 + $0x180]]
      %s206 = sld [smem:[#allocation5 + $0x181]]
      %s207 = sld [smem:[#allocation5 + $0x182]]
      %s208 = sld [smem:[#allocation5 + $0x183]]
      %s209 = sld [smem:[#allocation4]]
      %s210 = sld [smem:[#allocation4 + $0x1]]
      %s211 = sld [smem:[#allocation4 + $0x2]]
      %s212 = sld [smem:[#allocation4 + $0x3]]
      %s213 = sld [smem:[#allocation6]]
      %s214 = sld [smem:[#allocation6 + $0x1]]
      %s215 = sld [smem:[#allocation6 + $0x2]]
      %s216 = sld [smem:[#allocation6 + $0x3]]
      %v217 = vstv %s177
      %v218 = vmul.f32 %v170, %v217
      %v219 = vstv %s178
      %v220 = vmul.f32 %v172, %v219
      %v221 = vadd.f32 %v218, %v220
      %v222 = vstv %s179
      %v223 = vmul.f32 %v174, %v222
      %v224 = vadd.f32 %v221, %v223
      %v225 = vstv %s180
      %v226 = vmul.f32 %v176, %v225
      %v227 = vadd.f32 %v224, %v226
      %v228 = vstv %s209
      %v229 = vadd.f32 %v227, %v228
      %v230 = vtanh.pop %v229
      %v231 = vstv %s181
      %v232 = vmul.f32 %v170, %v231
      %v233 = vstv %s182
      %v234 = vmul.f32 %v172, %v233
      %v235 = vadd.f32 %v232, %v234
      %v236 = vstv %s183
      %v237 = vmul.f32 %v174, %v236
      %v238 = vadd.f32 %v235, %v237
      %v239 = vstv %s184
      %v240 = vmul.f32 %v176, %v239
      %v241 = vadd.f32 %v238, %v240
      %v242 = vstv %s210
      %v243 = vadd.f32 %v241, %v242
      %v244 = vtanh.pop %v243
      %v245 = vstv %s185
      %v246 = vmul.f32 %v170, %v245
      %v247 = vstv %s186
      %v248 = vmul.f32 %v172, %v247
      %v249 = vadd.f32 %v246, %v248
      %v250 = vstv %s187
      %v251 = vmul.f32 %v174, %v250
      %v252 = vadd.f32 %v249, %v251
      %v253 = vstv %s188
      %v254 = vmul.f32 %v176, %v253
      %v255 = vadd.f32 %v252, %v254
      %v256 = vstv %s211
      %v257 = vadd.f32 %v255, %v256
      %v258 = vtanh.pop %v257
      %v259 = vstv %s189
      %v260 = vmul.f32 %v170, %v259
      %v261 = vstv %s190
      %v262 = vmul.f32 %v172, %v261
      %v263 = vadd.f32 %v260, %v262
      %v264 = vstv %s191
      %v265 = vmul.f32 %v174, %v264
      %v266 = vadd.f32 %v263, %v265
      %v267 = vstv %s192
      %v268 = vmul.f32 %v176, %v267
      %v269 = vadd.f32 %v266, %v268
      %v270 = vstv %s212
      %v271 = vadd.f32 %v269, %v270
      %v272 = vtanh.pop %v271
      %v273 = vstv %s193
      %v274 = vmul.f32 %v230, %v273
      %v275 = vstv %s194
      %v276 = vmul.f32 %v244, %v275
      %v277 = vadd.f32 %v274, %v276
      %v278 = vstv %s195
      %v279 = vmul.f32 %v258, %v278
      %v280 = vadd.f32 %v277, %v279
      %v281 = vstv %s196
      %v282 = vmul.f32 %v272, %v281
      %v283 = vadd.f32 %v280, %v282
      %v284 = vstv %s213
      %v285 = vadd.f32 %v283, %v284
      %286 = vst [vmem:[%s169] sm:$0x3] %v285
      %v287 = vstv %s197
      %v288 = vmul.f32 %v230, %v287
      %v289 = vstv %s198
      %v290 = vmul.f32 %v244, %v289
      %v291 = vadd.f32 %v288, %v290
      %v292 = vstv %s199
      %v293 = vmul.f32 %v258, %v292
      %v294 = vadd.f32 %v291, %v293
      %v295 = vstv %s200
      %v296 = vmul.f32 %v272, %v295
      %v297 = vadd.f32 %v294, %v296
      %v298 = vstv %s214
      %v299 = vadd.f32 %v297, %v298
      %s300 = scalar_lea.vmem %s169, 2
      %301 = vst [vmem:[%s300] sm:$0x3] %v299
      %v302 = vstv %s201
      %v303 = vmul.f32 %v230, %v302
      %v304 = vstv %s202
      %v305 = vmul.f32 %v244, %v304
      %v306 = vadd.f32 %v303, %v305
      %v307 = vstv %s203
      %v308 = vmul.f32 %v258, %v307
      %v309 = vadd.f32 %v306, %v308
      %v310 = vstv %s204
      %v311 = vmul.f32 %v272, %v310
      %v312 = vadd.f32 %v309, %v311
      %v313 = vstv %s215
      %v314 = vadd.f32 %v312, %v313
      %s315 = scalar_lea.vmem %s169, 4
      %316 = vst [vmem:[%s315] sm:$0x3] %v314
      %v317 = vstv %s205
      %v318 = vmul.f32 %v230, %v317
      %v319 = vstv %s206
      %v320 = vmul.f32 %v244, %v319
      %v321 = vadd.f32 %v318, %v320
      %v322 = vstv %s207
      %v323 = vmul.f32 %v258, %v322
      %v324 = vadd.f32 %v321, %v323
      %v325 = vstv %s208
      %v326 = vmul.f32 %v272, %v325
      %v327 = vadd.f32 %v324, %v326
      %v328 = vstv %s216
      %v329 = vadd.f32 %v327, %v328
      %s330 = scalar_lea.vmem %s169, 6
      %331 = vst [vmem:[%s330] sm:$0x3] %v329
      %p332 = scmp.lt.s32.totalorder %s38, 1
      %s333 = scalar_select %p332, %s38, 1
      %p334 = scmp.lt.s32.totalorder %s39, 0
      %s335 = scalar_select %p334, %s39, 0
      %s336 = smul.addr %s333, 4
      %s337 = sadd.s32 %s335, %s336
      %s338 = smul.addr %s337, 2
      %s339 = scalar_lea.vmem %s5, %s338
      // Predicated region
      $region25: #{mlp_pallas.1} parent=23 // pred_check
        %p340 = pneg %p94
      $region26: #{mlp_pallas.1} parent=23 // pred_check_branch
        %342 = sbr.rel (%p340) target = $region28
      $region27: #{mlp_pallas.1} parent=23 // pred_region
        _
      $region28: #{mlp_pallas.1} parent=23 // pred_fallthru
        _
    $region24: #{mlp_pallas.1} parent=5 // pred_fallthru
      _
    %p343 = scmp.le.s32.totalorder 2, %s29
    // Predicated region
    $region29: #{mlp_pallas.1} parent=5 // pred_check
      %p344 = pneg %p343
    $region30: #{mlp_pallas.1} parent=5 // pred_check_branch
      %346 = sbr.rel (%p344) target = $region32
    $region31: #{mlp_pallas.1} parent=5 // pred_region
      %s347 = ssub.s32 %s29, 2
      // Predicated region
      $region33: #{mlp_pallas.1} parent=31 // pred_check
        %p348 = pneg %p100
      $region34: #{mlp_pallas.1} parent=31 // pred_check_branch
        %350 = sbr.rel (%p348) target = $region36
      $region35: #{mlp_pallas.1} parent=31 // pred_region
        %p351 = scmp.lt.s32.totalorder %s40, 1
        %s352 = scalar_select %p351, %s40, 1
        %p353 = scmp.lt.s32.totalorder %s41, 0
        %s354 = scalar_select %p353, %s41, 0
        %s355 = smul.addr %s352, 4
        %s356 = sadd.s32 %s354, %s355
        %s357 = smul.addr %s356, 2
        %s358 = scalar_lea.vmem %s5, %s357
      $region36: #{mlp_pallas.1} parent=31 // pred_fallthru
        _
    $region32: #{mlp_pallas.1} parent=5 // pred_fallthru
      _
  $region6: #{mlp_pallas.1} parent=0 // loop_footer
    %s33 = sadd.s32 1, %s29
  $region7: #{mlp_pallas.1} parent=0 // loop_footer_branch
    %28 = sbr.rel target = $region3
  $region8: #{mlp_pallas.1} parent=0 // loop_exit
    _

</llo_original>
